<compile_context>
chip_gen: v5e
topology: v5e:2x2
jax: 0.10.0
libtpu: 0.0.40
codegen_flags: <defaults>
</compile_context>

<pallas_src>
import functools

import jax
import jax.numpy as jnp
from jax.experimental import pallas as pl
from jax.experimental.pallas import tpu as pltpu

N_LAYERS = 8        # hidden (neurons -> neurons, bias-free) tanh layers
NEURONS = 12        # hidden width
IN_DIM = 2          # input features
OUT_DIM = 3         # output features
PAD = 128           # lane width / MXU tile edge
OUT_PAD = 8         # padded output lanes written to HBM (>= OUT_DIM)
N_SLABS = N_LAYERS + 2  # [first (W0^T rows + bias row), 8 hidden, output]


def _round_up(n, m):
    return ((n + m - 1) // m) * m


def _mlp_kernel(x_ref, w_ref, o_ref):
    # x_ref: (TB, IN_DIM)          raw, unpadded input tile
    # w_ref: (N_SLABS, PAD, PAD)   pre-expanded zero-padded weights (resident)
    #        slab 0: rows 0..IN_DIM-1 = W0^T rows, row IN_DIM = bias b0
    #        slabs 1..N_LAYERS: hidden W^T, slab N_LAYERS+1: Wout^T
    # o_ref: (TB, OUT_PAD)         sigmoid output, real data in [:, :OUT_DIM]
    x = x_ref[...]                                   # (TB, IN_DIM)
    w0b = w_ref[0]                                   # (PAD, PAD)

    # --- Layer 0 on the VPU: h = tanh(x @ W0^T + b0) as broadcast FMAs. ---
    # Padding lanes (>= NEURONS) of w0b (incl. the bias row) are zero, so
    # h's padding lanes are tanh(0) = 0 and stay 0 through every later layer.
    acc = w0b[IN_DIM:IN_DIM + 1, :]                  # bias row, (1, PAD)
    for f in range(IN_DIM):                          # static unroll (2 features)
        acc = acc + x[:, f:f + 1] * w0b[f:f + 1, :]
    h = jnp.tanh(acc)                                # (TB, PAD)

    # --- 8 hidden layers: dot directly against the resident padded slabs. ---
    for layer in range(1, N_LAYERS + 1):             # static unroll
        h = jnp.tanh(jnp.dot(h, w_ref[layer],
                             preferred_element_type=jnp.float32))

    # --- Output layer + sigmoid. Only lanes [:OUT_DIM] carry real data; we
    # store just OUT_PAD lanes to cut padded HBM writeback 16x. ---
    logits = jnp.dot(h, w_ref[N_LAYERS + 1],
                     preferred_element_type=jnp.float32)
    o_ref[...] = jax.nn.sigmoid(logits[:, :OUT_PAD])


def prepare_params(w0, b0, wmid, wout):
    """Pack PyTorch-layout parameters into the pre-expanded kernel layout.

    Call ONCE (hoisted out of the per-forward path); reuse the result for
    every call to `basic_net_forward`.

    w0:   (NEURONS, IN_DIM)  PyTorch (out, in), with bias b0: (NEURONS,)
    wmid: (N_LAYERS, NEURONS, NEURONS) PyTorch (out, in), bias-free
    wout: (OUT_DIM, NEURONS) PyTorch (out, in), bias-free
    returns packed f32[N_SLABS, PAD, PAD]  (zero-padded, ~640 KiB)
    """
    packed = jnp.zeros((N_SLABS, PAD, PAD), jnp.float32)
    packed = packed.at[0, :IN_DIM, :NEURONS].set(w0.T.astype(jnp.float32))
    packed = packed.at[0, IN_DIM, :NEURONS].set(b0.astype(jnp.float32))
    packed = packed.at[1:N_LAYERS + 1, :NEURONS, :NEURONS].set(
        jnp.transpose(wmid, (0, 2, 1)).astype(jnp.float32))
    packed = packed.at[N_LAYERS + 1, :NEURONS, :OUT_DIM].set(
        wout.T.astype(jnp.float32))
    return packed


@functools.partial(jax.jit, static_argnames=("batch_tile",))
def basic_net_forward(x, packed_w, batch_tile=2048):
    """Pallas forward of BasicNet.

    x:        (B, IN_DIM) float32
    packed_w: f32[N_SLABS, PAD, PAD] from prepare_params (built once)
    returns   (B, OUT_DIM) float32
    """
    B = x.shape[0]
    b_pad8 = _round_up(B, 8)
    # Batch tile: large (amortize ~0.35 us/step, long MXU streams) but capped
    # at half the batch so the grid has >= 2 steps and both v7x TensorCores
    # get work on mid-size batches.  Always a multiple of 8 (sublane).
    tb = min(batch_tile, _round_up(max(b_pad8 // 2, 8), 8))
    b_pad = _round_up(B, tb)
    if b_pad != B:
        x = jnp.pad(x, ((0, b_pad - B), (0, 0)))
    grid = (b_pad // tb,)

    cost = pl.CostEstimate(
        # 9 MXU matmuls (8 hidden + output) over (b_pad,128)x(128,128) + the
        # small VPU layer-0 FMAs.
        flops=2 * (N_LAYERS + 1) * b_pad * PAD * PAD + 2 * IN_DIM * b_pad * PAD,
        # 9 tanh layers + sigmoid, each over a (b_pad, 128) activation.
        transcendentals=(N_LAYERS + 2) * b_pad * PAD,
        bytes_accessed=(b_pad * IN_DIM + b_pad * OUT_PAD
                        + N_SLABS * PAD * PAD) * 4,
    )

    out_p = pl.pallas_call(
        _mlp_kernel,
        out_shape=jax.ShapeDtypeStruct((b_pad, OUT_PAD), jnp.float32),
        grid_spec=pltpu.PrefetchScalarGridSpec(
            num_scalar_prefetch=0,
            grid=grid,
            in_specs=[
                # Raw (TB, 2) input tile: last dim == full array dim (legal).
                pl.BlockSpec((tb, IN_DIM), lambda i: (i, 0)),
                # Pre-expanded weight slab, same block every step => DMA'd
                # once, stays resident in VMEM across the whole grid.
                pl.BlockSpec((N_SLABS, PAD, PAD), lambda i: (0, 0, 0)),
            ],
            # Narrow (TB, 8) output: 16x less padded HBM writeback; last dim
            # equals the full array dim, so the BlockSpec is legal.
            out_specs=pl.BlockSpec((tb, OUT_PAD), lambda i: (i, 0)),
        ),
        compiler_params=pltpu.CompilerParams(
            # Batch tiles are independent: pipeline + megacore/v7x dual-TC.
            dimension_semantics=("parallel",),
        ),
        cost_estimate=cost,
    )(x, packed_w)

    # Only rows [:B] and lanes [:OUT_DIM] carry real data.
    return out_p[:B, :OUT_DIM]


def reference_forward(x, w0, b0, wmid, wout):
    h = jnp.tanh(x @ w0.T + b0)
    for i in range(N_LAYERS):
        h = jnp.tanh(h @ wmid[i].T)
    return jax.nn.sigmoid(h @ wout.T)


if __name__ == "__main__":
    key = jax.random.PRNGKey(0)
    k_x, k_w0, k_b0, k_wm, k_wo = jax.random.split(key, 5)

    # Deterministic parameter init (nn.init.normal_ on Linear weights; the
    # first layer's bias from a small deterministic normal draw here).
    w0 = jax.random.normal(k_w0, (NEURONS, IN_DIM), jnp.float32)
    b0 = jax.random.normal(k_b0, (NEURONS,), jnp.float32) * 0.1
    wmid = jax.random.normal(k_wm, (N_LAYERS, NEURONS, NEURONS), jnp.float32)
    wout = jax.random.normal(k_wo, (OUT_DIM, NEURONS), jnp.float32)

    # Pack weights ONCE (hoisted out of the per-call path).
    packed_w = jax.block_until_ready(prepare_params(w0, b0, wmid, wout))

    # Small batch (single grid step).
    B = 8
    x = jax.random.normal(k_x, (B, IN_DIM), jnp.float32)
    out = jax.block_until_ready(basic_net_forward(x, packed_w))
    ref = reference_forward(x, w0, b0, wmid, wout)
    assert out.shape == (B, OUT_DIM)
    assert jnp.allclose(out, ref, atol=1e-5, rtol=1e-5), "mismatch vs reference"

    # Ragged batch (exercises padding + the >=2-step parallel grid path).
    B2 = 300
    x2 = jax.random.normal(k_x, (B2, IN_DIM), jnp.float32)
    out2 = jax.block_until_ready(basic_net_forward(x2, packed_w))
    ref2 = reference_forward(x2, w0, b0, wmid, wout)
    assert out2.shape == (B2, OUT_DIM)
    assert jnp.allclose(out2, ref2, atol=1e-5, rtol=1e-5), "mismatch vs reference"

    print("KERNEL_OK")
</pallas_src>

<mosaic_0001>
module attributes {stable_mosaic.version = 11 : i64} {
  func.func @_mlp_kernel(%arg0: i32, %arg1: memref<8x2xf32, #tpu.memory_space<vmem>>, %arg2: memref<10x128x128xf32, #tpu.memory_space<vmem>>, %arg3: memref<8x8xf32, #tpu.memory_space<vmem>>) attributes {dimension_semantics = [#tpu.dimension_semantics<parallel>], iteration_bounds = array<i64: 1>, scalar_prefetch = 0 : i64, scratch_operands = 0 : i64, tpu.core_type = #tpu.core_type<tc>, window_params = [{transform_indices = @transform_0, window_bounds = array<i64: 8, 2>}, {pipeline_mode = #tpu.pipeline_mode<synchronous>, transform_indices = @transform_1, window_bounds = array<i64: 10, 128, 128>}, {transform_indices = @transform_2, window_bounds = array<i64: 8, 8>}]} {
    %c0 = arith.constant 0 : index
    %c0_0 = arith.constant 0 : index
    %0 = vector.load %arg1[%c0, %c0_0] : memref<8x2xf32, #tpu.memory_space<vmem>>, vector<8x2xf32>
    %c0_1 = arith.constant 0 : index
    %c0_2 = arith.constant 0 : index
    %c0_3 = arith.constant 0 : index
    %1 = vector.load %arg2[%c0_1, %c0_2, %c0_3] : memref<10x128x128xf32, #tpu.memory_space<vmem>>, vector<1x128x128xf32>
    %2 = vector.shape_cast %1 : vector<1x128x128xf32> to vector<128x128xf32>
    %3 = vector.extract_strided_slice %2 {offsets = [2, 0], sizes = [1, 128], strides = [1, 1]} : vector<128x128xf32> to vector<1x128xf32>
    %4 = vector.extract_strided_slice %0 {offsets = [0, 0], sizes = [8, 1], strides = [1, 1]} : vector<8x2xf32> to vector<8x1xf32>
    %5 = vector.extract_strided_slice %2 {offsets = [0, 0], sizes = [1, 128], strides = [1, 1]} : vector<128x128xf32> to vector<1x128xf32>
    %6 = vector.broadcast %4 : vector<8x1xf32> to vector<8x128xf32>
    %7 = vector.broadcast %5 : vector<1x128xf32> to vector<8x128xf32>
    %8 = arith.mulf %6, %7 : vector<8x128xf32>
    %9 = vector.broadcast %3 : vector<1x128xf32> to vector<8x128xf32>
    %10 = arith.addf %9, %8 : vector<8x128xf32>
    %11 = vector.extract_strided_slice %0 {offsets = [0, 1], sizes = [8, 1], strides = [1, 1]} : vector<8x2xf32> to vector<8x1xf32>
    %12 = vector.extract_strided_slice %2 {offsets = [1, 0], sizes = [1, 128], strides = [1, 1]} : vector<128x128xf32> to vector<1x128xf32>
    %13 = vector.broadcast %11 : vector<8x1xf32> to vector<8x128xf32>
    %14 = vector.broadcast %12 : vector<1x128xf32> to vector<8x128xf32>
    %15 = arith.mulf %13, %14 : vector<8x128xf32>
    %16 = arith.addf %10, %15 : vector<8x128xf32>
    %17 = math.tanh %16 : vector<8x128xf32>
    %c1 = arith.constant 1 : index
    %c0_4 = arith.constant 0 : index
    %c0_5 = arith.constant 0 : index
    %18 = vector.load %arg2[%c1, %c0_4, %c0_5] : memref<10x128x128xf32, #tpu.memory_space<vmem>>, vector<1x128x128xf32>
    %19 = vector.shape_cast %18 : vector<1x128x128xf32> to vector<128x128xf32>
    %cst = arith.constant dense<0.000000e+00> : vector<8x128xf32>
    %20 = tpu.matmul %17, %19, %cst {dimension_numbers = #tpu.dot_dimension_numbers<[1], [0], [0], [1], [0, 0, 1, 1], [], []>} : vector<8x128xf32>, vector<128x128xf32>, vector<8x128xf32> -> vector<8x128xf32>
    %21 = math.tanh %20 : vector<8x128xf32>
    %c2 = arith.constant 2 : index
    %c0_6 = arith.constant 0 : index
    %c0_7 = arith.constant 0 : index
    %22 = vector.load %arg2[%c2, %c0_6, %c0_7] : memref<10x128x128xf32, #tpu.memory_space<vmem>>, vector<1x128x128xf32>
    %23 = vector.shape_cast %22 : vector<1x128x128xf32> to vector<128x128xf32>
    %cst_8 = arith.constant dense<0.000000e+00> : vector<8x128xf32>
    %24 = tpu.matmul %21, %23, %cst_8 {dimension_numbers = #tpu.dot_dimension_numbers<[1], [0], [0], [1], [0, 0, 1, 1], [], []>} : vector<8x128xf32>, vector<128x128xf32>, vector<8x128xf32> -> vector<8x128xf32>
    %25 = math.tanh %24 : vector<8x128xf32>
    %c3 = arith.constant 3 : index
    %c0_9 = arith.constant 0 : index
    %c0_10 = arith.constant 0 : index
    %26 = vector.load %arg2[%c3, %c0_9, %c0_10] : memref<10x128x128xf32, #tpu.memory_space<vmem>>, vector<1x128x128xf32>
    %27 = vector.shape_cast %26 : vector<1x128x128xf32> to vector<128x128xf32>
    %cst_11 = arith.constant dense<0.000000e+00> : vector<8x128xf32>
    %28 = tpu.matmul %25, %27, %cst_11 {dimension_numbers = #tpu.dot_dimension_numbers<[1], [0], [0], [1], [0, 0, 1, 1], [], []>} : vector<8x128xf32>, vector<128x128xf32>, vector<8x128xf32> -> vector<8x128xf32>
    %29 = math.tanh %28 : vector<8x128xf32>
    %c4 = arith.constant 4 : index
    %c0_12 = arith.constant 0 : index
    %c0_13 = arith.constant 0 : index
    %30 = vector.load %arg2[%c4, %c0_12, %c0_13] : memref<10x128x128xf32, #tpu.memory_space<vmem>>, vector<1x128x128xf32>
    %31 = vector.shape_cast %30 : vector<1x128x128xf32> to vector<128x128xf32>
    %cst_14 = arith.constant dense<0.000000e+00> : vector<8x128xf32>
    %32 = tpu.matmul %29, %31, %cst_14 {dimension_numbers = #tpu.dot_dimension_numbers<[1], [0], [0], [1], [0, 0, 1, 1], [], []>} : vector<8x128xf32>, vector<128x128xf32>, vector<8x128xf32> -> vector<8x128xf32>
    %33 = math.tanh %32 : vector<8x128xf32>
    %c5 = arith.constant 5 : index
    %c0_15 = arith.constant 0 : index
    %c0_16 = arith.constant 0 : index
    %34 = vector.load %arg2[%c5, %c0_15, %c0_16] : memref<10x128x128xf32, #tpu.memory_space<vmem>>, vector<1x128x128xf32>
    %35 = vector.shape_cast %34 : vector<1x128x128xf32> to vector<128x128xf32>
    %cst_17 = arith.constant dense<0.000000e+00> : vector<8x128xf32>
    %36 = tpu.matmul %33, %35, %cst_17 {dimension_numbers = #tpu.dot_dimension_numbers<[1], [0], [0], [1], [0, 0, 1, 1], [], []>} : vector<8x128xf32>, vector<128x128xf32>, vector<8x128xf32> -> vector<8x128xf32>
    %37 = math.tanh %36 : vector<8x128xf32>
    %c6 = arith.constant 6 : index
    %c0_18 = arith.constant 0 : index
    %c0_19 = arith.constant 0 : index
    %38 = vector.load %arg2[%c6, %c0_18, %c0_19] : memref<10x128x128xf32, #tpu.memory_space<vmem>>, vector<1x128x128xf32>
    %39 = vector.shape_cast %38 : vector<1x128x128xf32> to vector<128x128xf32>
    %cst_20 = arith.constant dense<0.000000e+00> : vector<8x128xf32>
    %40 = tpu.matmul %37, %39, %cst_20 {dimension_numbers = #tpu.dot_dimension_numbers<[1], [0], [0], [1], [0, 0, 1, 1], [], []>} : vector<8x128xf32>, vector<128x128xf32>, vector<8x128xf32> -> vector<8x128xf32>
    %41 = math.tanh %40 : vector<8x128xf32>
    %c7 = arith.constant 7 : index
    %c0_21 = arith.constant 0 : index
    %c0_22 = arith.constant 0 : index
    %42 = vector.load %arg2[%c7, %c0_21, %c0_22] : memref<10x128x128xf32, #tpu.memory_space<vmem>>, vector<1x128x128xf32>
    %43 = vector.shape_cast %42 : vector<1x128x128xf32> to vector<128x128xf32>
    %cst_23 = arith.constant dense<0.000000e+00> : vector<8x128xf32>
    %44 = tpu.matmul %41, %43, %cst_23 {dimension_numbers = #tpu.dot_dimension_numbers<[1], [0], [0], [1], [0, 0, 1, 1], [], []>} : vector<8x128xf32>, vector<128x128xf32>, vector<8x128xf32> -> vector<8x128xf32>
    %45 = math.tanh %44 : vector<8x128xf32>
    %c8 = arith.constant 8 : index
    %c0_24 = arith.constant 0 : index
    %c0_25 = arith.constant 0 : index
    %46 = vector.load %arg2[%c8, %c0_24, %c0_25] : memref<10x128x128xf32, #tpu.memory_space<vmem>>, vector<1x128x128xf32>
    %47 = vector.shape_cast %46 : vector<1x128x128xf32> to vector<128x128xf32>
    %cst_26 = arith.constant dense<0.000000e+00> : vector<8x128xf32>
    %48 = tpu.matmul %45, %47, %cst_26 {dimension_numbers = #tpu.dot_dimension_numbers<[1], [0], [0], [1], [0, 0, 1, 1], [], []>} : vector<8x128xf32>, vector<128x128xf32>, vector<8x128xf32> -> vector<8x128xf32>
    %49 = math.tanh %48 : vector<8x128xf32>
    %c9 = arith.constant 9 : index
    %c0_27 = arith.constant 0 : index
    %c0_28 = arith.constant 0 : index
    %50 = vector.load %arg2[%c9, %c0_27, %c0_28] : memref<10x128x128xf32, #tpu.memory_space<vmem>>, vector<1x128x128xf32>
    %51 = vector.shape_cast %50 : vector<1x128x128xf32> to vector<128x128xf32>
    %cst_29 = arith.constant dense<0.000000e+00> : vector<8x128xf32>
    %52 = tpu.matmul %49, %51, %cst_29 {dimension_numbers = #tpu.dot_dimension_numbers<[1], [0], [0], [1], [0, 0, 1, 1], [], []>} : vector<8x128xf32>, vector<128x128xf32>, vector<8x128xf32> -> vector<8x128xf32>
    %53 = vector.extract_strided_slice %52 {offsets = [0, 0], sizes = [8, 8], strides = [1, 1]} : vector<8x128xf32> to vector<8x8xf32>
    %54 = arith.negf %53 : vector<8x8xf32>
    %55 = math.exp %54 : vector<8x8xf32>
    %cst_30 = arith.constant 1.000000e+00 : f32
    %56 = vector.broadcast %cst_30 : f32 to vector<8x8xf32>
    %57 = arith.addf %56, %55 : vector<8x8xf32>
    %58 = arith.divf %56, %57 : vector<8x8xf32>
    %c0_31 = arith.constant 0 : index
    %c0_32 = arith.constant 0 : index
    %59 = vector.load %arg3[%c0_31, %c0_32] : memref<8x8xf32, #tpu.memory_space<vmem>>, vector<8x8xf32>
    tpu.vector_store %arg3[%c0_31, %c0_32], %58 {strides = array<i32>} : memref<8x8xf32, #tpu.memory_space<vmem>>, vector<8x8xf32>,
    return
  }
  func.func @transform_0(%arg0: i32) -> (i32, i32) {
    %c0_i32 = arith.constant 0 : i32
    %c0_i32_0 = arith.constant 0 : i32
    return %arg0, %c0_i32 : i32, i32
  }
  func.func @transform_1(%arg0: i32) -> (i32, i32, i32) {
    %c0_i32 = arith.constant 0 : i32
    %c0_i32_0 = arith.constant 0 : i32
    %c0_i32_1 = arith.constant 0 : i32
    %c0_i32_2 = arith.constant 0 : i32
    return %c0_i32, %c0_i32_0, %c0_i32_1 : i32, i32, i32
  }
  func.func @transform_2(%arg0: i32) -> (i32, i32) {
    %c0_i32 = arith.constant 0 : i32
    %c0_i32_0 = arith.constant 0 : i32
    return %arg0, %c0_i32 : i32, i32
  }
}

</mosaic_0001>

<llo_original>
// kernel: basic_net_forward.1
$region0: #{basic_net_forward.1}
  #allocation0 [shape = 'u32[]', space=smem, size = 0x4, offset = 0x4, fixed_abs, tag = 'smem constant byte address 0x4 - core index']
  #allocation1 [shape = 'u32[72,128]{1,0:T(1,128)}', space=vmem, size = 0x9000, scoped, tag = 'internal scratch']
  %s0 = inlined_call_operand.vmem [shape: f32[8,2], index: 0, kind: input, shape index: {}]
  %s1 = inlined_call_operand.hbm [shape: f32[10,128,128], index: 1, kind: input, shape index: {}]
  %s2 = inlined_call_operand.vmem [shape: f32[8,8], index: 2, kind: output, shape index: {}]
  %s3 = sld [smem:[#allocation0]]
  $region22: #{basic_net_forward.1} parent=0
    _
  %s5 = ssub.s32 1, %s3
  %s6 = scalar_select 0, %s5, %s3
  $region1: #{basic_net_forward.1} parent=0
    #allocation2 [shape = 'u8[655360]{0}', space=vmem, size = 0xa0000, scoped, tag = 'input window, operand 1, single buffered']
    #allocation3 [shape = 's32[1]{0}', space=sflag, size = 0x4, scoped, tag = 'scoped memory for basic_net_forward.1']
    %7 = vsyncpa [#allocation3], 0
    // Predicated region
    $region2: #{basic_net_forward.1} parent=1 // pred_check
      _
    $region3: #{basic_net_forward.1} parent=1 // pred_check_branch
      %9 = sbr.rel (0) target = $region5
    $region4: #{basic_net_forward.1} parent=1 // pred_region
      _
    $region5: #{basic_net_forward.1} parent=1 // pred_fallthru
      _
    // Predicated region
    $region6: #{basic_net_forward.1} parent=1 // pred_check
      _
    $region7: #{basic_net_forward.1} parent=1 // pred_check_branch
      %11 = sbr.rel (0) target = $region9
    $region8: #{basic_net_forward.1} parent=1 // pred_region
      %13 = vsyncadd [#allocation3], 0
      %s14 = sshll.u32 %s1, 4
      %s15 = int_to_ptr.hbm [resolvable:$true] %s14
      %s16 = sshll.u32 [#allocation2], 4
      %s17 = int_to_ptr.vmem [resolvable:$true] %s16
      %22 = dma.hbm_to_vmem [thread:$0]  %s15, 20480, %s17, [#allocation3], 128, 128, 8
    $region9: #{basic_net_forward.1} parent=1 // pred_fallthru
      _
    // Predicated region
    $region10: #{basic_net_forward.1} parent=1 // pred_check
      _
    $region11: #{basic_net_forward.1} parent=1 // pred_check_branch
      %24 = sbr.rel (0) target = $region13
    $region12: #{basic_net_forward.1} parent=1 // pred_region
      %26 = dma.done [#allocation3], 20480
    $region13: #{basic_net_forward.1} parent=1 // pred_fallthru
      _
    %v27 = vld [vmem:[%s0] sm:$0xff]
    %v28 = vld [vmem:[#allocation2] sm:$0xff]
    %30 = vset.pattern.permute.xlu0 0
    %31 = vperm.xlu0 %30, %v27
    %v32 = vpop.permute.xlu0 %31
    %v34 = vperm.slane %v28, 0
    %v35 = vmul.f32 %v32, %v34
    %v36 = vperm.slane %v28, 2
    %v37 = vadd.f32 %v36, %v35
    %38 = vset.pattern.permute.xlu0 1
    %39 = vperm.xlu0 %38, %v27
    %v40 = vpop.permute.xlu0 %39
    %v42 = vperm.slane %v28, 1
    %v43 = vmul.f32 %v40, %v42
    %v44 = vadd.f32 %v37, %v43
    %v45 = vtanh.pop %v44
    %s46 = scalar_lea.vmem [#allocation2], 128
    %v47 = vld [vmem:[%s46] sm:$0xff]
    %v48 = vld [vmem:[%s46 + $0x8] sm:$0xff]
    %v49 = vld [vmem:[%s46 + $0x10] sm:$0xff]
    %v50 = vld [vmem:[%s46 + $0x18] sm:$0xff]
    %v51 = vld [vmem:[%s46 + $0x20] sm:$0xff]
    %v52 = vld [vmem:[%s46 + $0x28] sm:$0xff]
    %v53 = vld [vmem:[%s46 + $0x30] sm:$0xff]
    %v54 = vld [vmem:[%s46 + $0x38] sm:$0xff]
    %v55 = vld [vmem:[%s46 + $0x40] sm:$0xff]
    %v56 = vld [vmem:[%s46 + $0x48] sm:$0xff]
    %v57 = vld [vmem:[%s46 + $0x50] sm:$0xff]
    %v58 = vld [vmem:[%s46 + $0x58] sm:$0xff]
    %v59 = vld [vmem:[%s46 + $0x60] sm:$0xff]
    %v60 = vld [vmem:[%s46 + $0x68] sm:$0xff]
    %v61 = vld [vmem:[%s46 + $0x70] sm:$0xff]
    %v62 = vld [vmem:[%s46 + $0x78] sm:$0xff]
    %63 = vmatpush.msra.mxu0 %v62
    %64 = vmatpush.msra.mxu0 %v61
    %65 = vmatpush.msra.mxu0 %v60
    %66 = vmatpush.msra.mxu0 %v59
    %67 = vmatpush.msra.mxu0 %v58
    %68 = vmatpush.msra.mxu0 %v57
    %69 = vmatpush.msra.mxu0 %v56
    %70 = vmatpush.msra.mxu0 %v55
    %71 = vmatpush.msra.mxu0 %v54
    %72 = vmatpush.msra.mxu0 %v53
    %73 = vmatpush.msra.mxu0 %v52
    %74 = vmatpush.msra.mxu0 %v51
    %75 = vmatpush.msra.mxu0 %v50
    %76 = vmatpush.msra.mxu0 %v49
    %77 = vmatpush.msra.mxu0 %v48
    %78 = vmatpush.msra.mxu0 %v47
    %79 = vmatmul.f32.gmra.mxu0 %v45
    %v80 = vpop.f32.mrf.mxu0
    %v81 = vadd.f32 0.0, %v80
    %82 = vdwg.mxu0
    %v83 = vtanh.pop %v81
    %s84 = scalar_lea.vmem [#allocation2], 256
    %v85 = vld [vmem:[%s84] sm:$0xff]
    %v86 = vld [vmem:[%s84 + $0x8] sm:$0xff]
    %v87 = vld [vmem:[%s84 + $0x10] sm:$0xff]
    %v88 = vld [vmem:[%s84 + $0x18] sm:$0xff]
    %v89 = vld [vmem:[%s84 + $0x20] sm:$0xff]
    %v90 = vld [vmem:[%s84 + $0x28] sm:$0xff]
    %v91 = vld [vmem:[%s84 + $0x30] sm:$0xff]
    %v92 = vld [vmem:[%s84 + $0x38] sm:$0xff]
    %v93 = vld [vmem:[%s84 + $0x40] sm:$0xff]
    %v94 = vld [vmem:[%s84 + $0x48] sm:$0xff]
    %v95 = vld [vmem:[%s84 + $0x50] sm:$0xff]
    %v96 = vld [vmem:[%s84 + $0x58] sm:$0xff]
    %v97 = vld [vmem:[%s84 + $0x60] sm:$0xff]
    %v98 = vld [vmem:[%s84 + $0x68] sm:$0xff]
    %v99 = vld [vmem:[%s84 + $0x70] sm:$0xff]
    %v100 = vld [vmem:[%s84 + $0x78] sm:$0xff]
    %101 = vmatpush.msra.mxu0 %v100
    %102 = vmatpush.msra.mxu0 %v99
    %103 = vmatpush.msra.mxu0 %v98
    %104 = vmatpush.msra.mxu0 %v97
    %105 = vmatpush.msra.mxu0 %v96
    %106 = vmatpush.msra.mxu0 %v95
    %107 = vmatpush.msra.mxu0 %v94
    %108 = vmatpush.msra.mxu0 %v93
    %109 = vmatpush.msra.mxu0 %v92
    %110 = vmatpush.msra.mxu0 %v91
    %111 = vmatpush.msra.mxu0 %v90
    %112 = vmatpush.msra.mxu0 %v89
    %113 = vmatpush.msra.mxu0 %v88
    %114 = vmatpush.msra.mxu0 %v87
    %115 = vmatpush.msra.mxu0 %v86
    %116 = vmatpush.msra.mxu0 %v85
    %117 = vmatmul.f32.gmra.mxu0 %v83
    %v118 = vpop.f32.mrf.mxu0
    %v119 = vadd.f32 0.0, %v118
    %120 = vdwg.mxu0
    %v121 = vtanh.pop %v119
    %s122 = scalar_lea.vmem [#allocation2], 384
    %v123 = vld [vmem:[%s122] sm:$0xff]
    %v124 = vld [vmem:[%s122 + $0x8] sm:$0xff]
    %v125 = vld [vmem:[%s122 + $0x10] sm:$0xff]
    %v126 = vld [vmem:[%s122 + $0x18] sm:$0xff]
    %v127 = vld [vmem:[%s122 + $0x20] sm:$0xff]
    %v128 = vld [vmem:[%s122 + $0x28] sm:$0xff]
    %v129 = vld [vmem:[%s122 + $0x30] sm:$0xff]
    %v130 = vld [vmem:[%s122 + $0x38] sm:$0xff]
    %v131 = vld [vmem:[%s122 + $0x40] sm:$0xff]
    %v132 = vld [vmem:[%s122 + $0x48] sm:$0xff]
    %v133 = vld [vmem:[%s122 + $0x50] sm:$0xff]
    %v134 = vld [vmem:[%s122 + $0x58] sm:$0xff]
    %v135 = vld [vmem:[%s122 + $0x60] sm:$0xff]
    %v136 = vld [vmem:[%s122 + $0x68] sm:$0xff]
    %v137 = vld [vmem:[%s122 + $0x70] sm:$0xff]
    %v138 = vld [vmem:[%s122 + $0x78] sm:$0xff]
    %139 = vmatpush.msra.mxu0 %v138
    %140 = vmatpush.msra.mxu0 %v137
    %141 = vmatpush.msra.mxu0 %v136
    %142 = vmatpush.msra.mxu0 %v135
    %143 = vmatpush.msra.mxu0 %v134
    %144 = vmatpush.msra.mxu0 %v133
    %145 = vmatpush.msra.mxu0 %v132
    %146 = vmatpush.msra.mxu0 %v131
    %147 = vmatpush.msra.mxu0 %v130
    %148 = vmatpush.msra.mxu0 %v129
    %149 = vmatpush.msra.mxu0 %v128
    %150 = vmatpush.msra.mxu0 %v127
    %151 = vmatpush.msra.mxu0 %v126
    %152 = vmatpush.msra.mxu0 %v125
    %153 = vmatpush.msra.mxu0 %v124
    %154 = vmatpush.msra.mxu0 %v123
    %155 = vmatmul.f32.gmra.mxu0 %v121
    %v156 = vpop.f32.mrf.mxu0
    %v157 = vadd.f32 0.0, %v156
    %158 = vdwg.mxu0
    %v159 = vtanh.pop %v157
    %s160 = scalar_lea.vmem [#allocation2], 512
    %v161 = vld [vmem:[%s160] sm:$0xff]
    %v162 = vld [vmem:[%s160 + $0x8] sm:$0xff]
    %v163 = vld [vmem:[%s160 + $0x10] sm:$0xff]
    %v164 = vld [vmem:[%s160 + $0x18] sm:$0xff]
    %v165 = vld [vmem:[%s160 + $0x20] sm:$0xff]
    %v166 = vld [vmem:[%s160 + $0x28] sm:$0xff]
    %v167 = vld [vmem:[%s160 + $0x30] sm:$0xff]
    %v168 = vld [vmem:[%s160 + $0x38] sm:$0xff]
    %v169 = vld [vmem:[%s160 + $0x40] sm:$0xff]
    %v170 = vld [vmem:[%s160 + $0x48] sm:$0xff]
    %v171 = vld [vmem:[%s160 + $0x50] sm:$0xff]
    %v172 = vld [vmem:[%s160 + $0x58] sm:$0xff]
    %v173 = vld [vmem:[%s160 + $0x60] sm:$0xff]
    %v174 = vld [vmem:[%s160 + $0x68] sm:$0xff]
    %v175 = vld [vmem:[%s160 + $0x70] sm:$0xff]
    %v176 = vld [vmem:[%s160 + $0x78] sm:$0xff]
    %177 = vmatpush.msra.mxu0 %v176
    %178 = vmatpush.msra.mxu0 %v175
    %179 = vmatpush.msra.mxu0 %v174
    %180 = vmatpush.msra.mxu0 %v173
    %181 = vmatpush.msra.mxu0 %v172
    %182 = vmatpush.msra.mxu0 %v171
    %183 = vmatpush.msra.mxu0 %v170
    %184 = vmatpush.msra.mxu0 %v169
    %185 = vmatpush.msra.mxu0 %v168
    %186 = vmatpush.msra.mxu0 %v167
    %187 = vmatpush.msra.mxu0 %v166
    %188 = vmatpush.msra.mxu0 %v165
    %189 = vmatpush.msra.mxu0 %v164
    %190 = vmatpush.msra.mxu0 %v163
    %191 = vmatpush.msra.mxu0 %v162
    %192 = vmatpush.msra.mxu0 %v161
    %193 = vmatmul.f32.gmra.mxu0 %v159
    %v194 = vpop.f32.mrf.mxu0
    %v195 = vadd.f32 0.0, %v194
    %196 = vdwg.mxu0
    %v197 = vtanh.pop %v195
    %s198 = scalar_lea.vmem [#allocation2], 640
    %v199 = vld [vmem:[%s198] sm:$0xff]
    %v200 = vld [vmem:[%s198 + $0x8] sm:$0xff]
    %v201 = vld [vmem:[%s198 + $0x10] sm:$0xff]
    %v202 = vld [vmem:[%s198 + $0x18] sm:$0xff]
    %v203 = vld [vmem:[%s198 + $0x20] sm:$0xff]
    %v204 = vld [vmem:[%s198 + $0x28] sm:$0xff]
    %v205 = vld [vmem:[%s198 + $0x30] sm:$0xff]
    %v206 = vld [vmem:[%s198 + $0x38] sm:$0xff]
    %v207 = vld [vmem:[%s198 + $0x40] sm:$0xff]
    %v208 = vld [vmem:[%s198 + $0x48] sm:$0xff]
    %v209 = vld [vmem:[%s198 + $0x50] sm:$0xff]
    %v210 = vld [vmem:[%s198 + $0x58] sm:$0xff]
    %v211 = vld [vmem:[%s198 + $0x60] sm:$0xff]
    %v212 = vld [vmem:[%s198 + $0x68] sm:$0xff]
    %v213 = vld [vmem:[%s198 + $0x70] sm:$0xff]
    %v214 = vld [vmem:[%s198 + $0x78] sm:$0xff]
    %215 = vmatpush.msra.mxu0 %v214
    %216 = vmatpush.msra.mxu0 %v213
    %217 = vmatpush.msra.mxu0 %v212
    %218 = vmatpush.msra.mxu0 %v211
    %219 = vmatpush.msra.mxu0 %v210
    %220 = vmatpush.msra.mxu0 %v209
    %221 = vmatpush.msra.mxu0 %v208
    %222 = vmatpush.msra.mxu0 %v207
    %223 = vmatpush.msra.mxu0 %v206
    %224 = vmatpush.msra.mxu0 %v205
    %225 = vmatpush.msra.mxu0 %v204
    %226 = vmatpush.msra.mxu0 %v203
    %227 = vmatpush.msra.mxu0 %v202
    %228 = vmatpush.msra.mxu0 %v201
    %229 = vmatpush.msra.mxu0 %v200
    %230 = vmatpush.msra.mxu0 %v199
    %231 = vmatmul.f32.gmra.mxu0 %v197
    %v232 = vpop.f32.mrf.mxu0
    %v233 = vadd.f32 0.0, %v232
    %234 = vdwg.mxu0
    %v235 = vtanh.pop %v233
    %s236 = scalar_lea.vmem [#allocation2], 768
    %v237 = vld [vmem:[%s236] sm:$0xff]
    %v238 = vld [vmem:[%s236 + $0x8] sm:$0xff]
    %v239 = vld [vmem:[%s236 + $0x10] sm:$0xff]
    %v240 = vld [vmem:[%s236 + $0x18] sm:$0xff]
    %v241 = vld [vmem:[%s236 + $0x20] sm:$0xff]
    %v242 = vld [vmem:[%s236 + $0x28] sm:$0xff]
    %v243 = vld [vmem:[%s236 + $0x30] sm:$0xff]
    %v244 = vld [vmem:[%s236 + $0x38] sm:$0xff]
    %v245 = vld [vmem:[%s236 + $0x40] sm:$0xff]
    %v246 = vld [vmem:[%s236 + $0x48] sm:$0xff]
    %v247 = vld [vmem:[%s236 + $0x50] sm:$0xff]
    %v248 = vld [vmem:[%s236 + $0x58] sm:$0xff]
    %v249 = vld [vmem:[%s236 + $0x60] sm:$0xff]
    %v250 = vld [vmem:[%s236 + $0x68] sm:$0xff]
    %v251 = vld [vmem:[%s236 + $0x70] sm:$0xff]
    %v252 = vld [vmem:[%s236 + $0x78] sm:$0xff]
    %253 = vmatpush.msra.mxu0 %v252
    %254 = vmatpush.msra.mxu0 %v251
    %255 = vmatpush.msra.mxu0 %v250
    %256 = vmatpush.msra.mxu0 %v249
    %257 = vmatpush.msra.mxu0 %v248
    %258 = vmatpush.msra.mxu0 %v247
    %259 = vmatpush.msra.mxu0 %v246
    %260 = vmatpush.msra.mxu0 %v245
    %261 = vmatpush.msra.mxu0 %v244
    %262 = vmatpush.msra.mxu0 %v243
    %263 = vmatpush.msra.mxu0 %v242
    %264 = vmatpush.msra.mxu0 %v241
    %265 = vmatpush.msra.mxu0 %v240
    %266 = vmatpush.msra.mxu0 %v239
    %267 = vmatpush.msra.mxu0 %v238
    %268 = vmatpush.msra.mxu0 %v237
    %269 = vmatmul.f32.gmra.mxu0 %v235
    %v270 = vpop.f32.mrf.mxu0
    %v271 = vadd.f32 0.0, %v270
    %272 = vdwg.mxu0
    %v273 = vtanh.pop %v271
    %s274 = scalar_lea.vmem [#allocation2], 896
    %v275 = vld [vmem:[%s274] sm:$0xff]
    %v276 = vld [vmem:[%s274 + $0x8] sm:$0xff]
    %v277 = vld [vmem:[%s274 + $0x10] sm:$0xff]
    %v278 = vld [vmem:[%s274 + $0x18] sm:$0xff]
    %v279 = vld [vmem:[%s274 + $0x20] sm:$0xff]
    %v280 = vld [vmem:[%s274 + $0x28] sm:$0xff]
    %v281 = vld [vmem:[%s274 + $0x30] sm:$0xff]
    %v282 = vld [vmem:[%s274 + $0x38] sm:$0xff]
    %v283 = vld [vmem:[%s274 + $0x40] sm:$0xff]
    %v284 = vld [vmem:[%s274 + $0x48] sm:$0xff]
    %v285 = vld [vmem:[%s274 + $0x50] sm:$0xff]
    %v286 = vld [vmem:[%s274 + $0x58] sm:$0xff]
    %v287 = vld [vmem:[%s274 + $0x60] sm:$0xff]
    %v288 = vld [vmem:[%s274 + $0x68] sm:$0xff]
    %v289 = vld [vmem:[%s274 + $0x70] sm:$0xff]
    %v290 = vld [vmem:[%s274 + $0x78] sm:$0xff]
    %291 = vmatpush.msra.mxu0 %v290
    %292 = vmatpush.msra.mxu0 %v289
    %293 = vmatpush.msra.mxu0 %v288
    %294 = vmatpush.msra.mxu0 %v287
    %295 = vmatpush.msra.mxu0 %v286
    %296 = vmatpush.msra.mxu0 %v285
    %297 = vmatpush.msra.mxu0 %v284
    %298 = vmatpush.msra.mxu0 %v283
    %299 = vmatpush.msra.mxu0 %v282
    %300 = vmatpush.msra.mxu0 %v281
    %301 = vmatpush.msra.mxu0 %v280
    %302 = vmatpush.msra.mxu0 %v279
    %303 = vmatpush.msra.mxu0 %v278
    %304 = vmatpush.msra.mxu0 %v277
    %305 = vmatpush.msra.mxu0 %v276
    %306 = vmatpush.msra.mxu0 %v275
    %307 = vmatmul.f32.gmra.mxu0 %v273
    %v308 = vpop.f32.mrf.mxu0
    %v309 = vadd.f32 0.0, %v308
    %310 = vdwg.mxu0
    %v311 = vtanh.pop %v309
    %s312 = scalar_lea.vmem [#allocation2], 1024
    %v313 = vld [vmem:[%s312] sm:$0xff]
    %v314 = vld [vmem:[%s312 + $0x8] sm:$0xff]
    %v315 = vld [vmem:[%s312 + $0x10] sm:$0xff]
    %v316 = vld [vmem:[%s312 + $0x18] sm:$0xff]
    %v317 = vld [vmem:[%s312 + $0x20] sm:$0xff]
    %v318 = vld [vmem:[%s312 + $0x28] sm:$0xff]
    %v319 = vld [vmem:[%s312 + $0x30] sm:$0xff]
    %v320 = vld [vmem:[%s312 + $0x38] sm:$0xff]
    %v321 = vld [vmem:[%s312 + $0x40] sm:$0xff]
    %v322 = vld [vmem:[%s312 + $0x48] sm:$0xff]
    %v323 = vld [vmem:[%s312 + $0x50] sm:$0xff]
    %v324 = vld [vmem:[%s312 + $0x58] sm:$0xff]
    %v325 = vld [vmem:[%s312 + $0x60] sm:$0xff]
    %v326 = vld [vmem:[%s312 + $0x68] sm:$0xff]
    %v327 = vld [vmem:[%s312 + $0x70] sm:$0xff]
    %v328 = vld [vmem:[%s312 + $0x78] sm:$0xff]
    %329 = vmatpush.msra.mxu0 %v328
    %330 = vmatpush.msra.mxu0 %v327
    %331 = vmatpush.msra.mxu0 %v326
    %332 = vmatpush.msra.mxu0 %v325
    %333 = vmatpush.msra.mxu0 %v324
    %334 = vmatpush.msra.mxu0 %v323
    %335 = vmatpush.msra.mxu0 %v322
    %336 = vmatpush.msra.mxu0 %v321
    %337 = vmatpush.msra.mxu0 %v320
    %338 = vmatpush.msra.mxu0 %v319
    %339 = vmatpush.msra.mxu0 %v318
    %340 = vmatpush.msra.mxu0 %v317
    %341 = vmatpush.msra.mxu0 %v316
    %342 = vmatpush.msra.mxu0 %v315
    %343 = vmatpush.msra.mxu0 %v314
    %344 = vmatpush.msra.mxu0 %v313
    %345 = vmatmul.f32.gmra.mxu0 %v311
    %v346 = vpop.f32.mrf.mxu0
    %v347 = vadd.f32 0.0, %v346
    %348 = vdwg.mxu0
    %v349 = vtanh.pop %v347
    %s350 = scalar_lea.vmem [#allocation2], 1152
    %v351 = vld [vmem:[%s350] sm:$0xff]
    %v352 = vld [vmem:[%s350 + $0x8] sm:$0xff]
    %v353 = vld [vmem:[%s350 + $0x10] sm:$0xff]
    %v354 = vld [vmem:[%s350 + $0x18] sm:$0xff]
    %v355 = vld [vmem:[%s350 + $0x20] sm:$0xff]
    %v356 = vld [vmem:[%s350 + $0x28] sm:$0xff]
    %v357 = vld [vmem:[%s350 + $0x30] sm:$0xff]
    %v358 = vld [vmem:[%s350 + $0x38] sm:$0xff]
    %v359 = vld [vmem:[%s350 + $0x40] sm:$0xff]
    %v360 = vld [vmem:[%s350 + $0x48] sm:$0xff]
    %v361 = vld [vmem:[%s350 + $0x50] sm:$0xff]
    %v362 = vld [vmem:[%s350 + $0x58] sm:$0xff]
    %v363 = vld [vmem:[%s350 + $0x60] sm:$0xff]
    %v364 = vld [vmem:[%s350 + $0x68] sm:$0xff]
    %v365 = vld [vmem:[%s350 + $0x70] sm:$0xff]
    %v366 = vld [vmem:[%s350 + $0x78] sm:$0xff]
    %367 = vmatpush.msra.mxu0 %v366
    %368 = vmatpush.msra.mxu0 %v365
    %369 = vmatpush.msra.mxu0 %v364
    %370 = vmatpush.msra.mxu0 %v363
    %371 = vmatpush.msra.mxu0 %v362
    %372 = vmatpush.msra.mxu0 %v361
    %373 = vmatpush.msra.mxu0 %v360
    %374 = vmatpush.msra.mxu0 %v359
    %375 = vmatpush.msra.mxu0 %v358
    %376 = vmatpush.msra.mxu0 %v357
    %377 = vmatpush.msra.mxu0 %v356
    %378 = vmatpush.msra.mxu0 %v355
    %379 = vmatpush.msra.mxu0 %v354
    %380 = vmatpush.msra.mxu0 %v353
    %381 = vmatpush.msra.mxu0 %v352
    %382 = vmatpush.msra.mxu0 %v351
    %383 = vmatmul.f32.gmra.mxu0 %v349
    %v384 = vpop.f32.mrf.mxu0
    %v385 = vadd.f32 0.0, %v384
    %386 = vdwg.mxu0
    %v387 = vxor.u32 %v385, 2147483648
    %v388 = vmul.f32 %v387, 1.442695
    %v389 = vpow.pop %v388
    %v390 = vadd.f32 %v389, 1.0
    %v391 = vrcp.pop %v390
    %v392 = vmul.f32 %v390, %v391
    %v393 = vsub.f32 1.0, %v392
    %v394 = vmul.f32 %v391, %v393
    %v395 = vadd.f32 %v391, %v394
    %vm396 = vweird.f32 %v390
    %vm397 = vweird.f32 %v391
    %vm398 = vmor %vm396, %vm397
    %v399 = vsel %vm398, %v391, %v395
    %v400 = vand.u32 2147483647, %v390
    %vm401 = vcmp.eq.f32.partialorder %v400, 8.507059e+37
    %v402 = vand.u32 %v390, 2147483648
    %v403 = vor.u32 1.1754944e-38, %v402
    %v404 = vsel %vm401, %v403, %v399
    %v405 = vmul.f32 1.0, %v404
    %vm406 = vcmask 64512
    %407 = vst.msk [vmem:[%s2] sm:$0xff] %vm406, %v405
    // Predicated region
    $region14: #{basic_net_forward.1} parent=1 // pred_check
      _
    $region15: #{basic_net_forward.1} parent=1 // pred_check_branch
      %409 = sbr.rel (0) target = $region17
    $region16: #{basic_net_forward.1} parent=1 // pred_region
      _
    $region17: #{basic_net_forward.1} parent=1 // pred_fallthru
      _
    // Predicated region
    $region18: #{basic_net_forward.1} parent=1 // pred_check
      _
    $region19: #{basic_net_forward.1} parent=1 // pred_check_branch
      %411 = sbr.rel (0) target = $region21
    $region20: #{basic_net_forward.1} parent=1 // pred_region
      _
    $region21: #{basic_net_forward.1} parent=1 // pred_fallthru
      _
    %412 = vsyncpa [#allocation3], 1

</llo_original>
